<compile_context>
chip_gen: v5e
topology: v5e:2x2
jax: 0.10.0
libtpu: 0.0.40
codegen_flags: <defaults>
</compile_context>

<pallas_src>
import functools

import jax
import jax.numpy as jnp
from jax.experimental import pallas as pl
from jax.experimental.pallas import tpu as pltpu


def _pe_kernel(ts_ref, div_ref, sin_ref, cos_ref):
    # ts_ref : (TB, L) f32 — lane group p*half+j carries timestep t_{row*pack+p}
    # div_ref: (1,  L) f32 — lane group p*half+j carries div_term[j] (tiled)
    # sin_ref/cos_ref: (TB, L) f32 outputs (packed, lane-dense)
    phase = ts_ref[...] * div_ref[...]          # one VPU mul per phase element
    sin_ref[...] = jnp.sin(phase)               # one EUP op per output element
    cos_ref[...] = jnp.cos(phase)               # no wasted work, no mask/select


@functools.partial(jax.jit, static_argnums=(1, 2, 3))
def sine_positional_encoding(timestep: jnp.ndarray,
                             dimension: int,
                             max_timesteps: int = 1000,
                             row_tile: int = 512) -> jnp.ndarray:
    """Pallas equivalent of SinePositionalEncoding.forward(timestep)."""
    assert dimension % 2 == 0, "Embedding dimension must be even"
    # timesteps are cast int->f32; exact up to 2^24 (max_timesteps=1000 is fine)
    assert max_timesteps <= (1 << 24), "timesteps not exactly representable in f32"

    half = dimension // 2
    orig_shape = timestep.shape
    ts_flat = timestep.reshape(-1).astype(jnp.float32)
    n = ts_flat.shape[0]

    # Lane packing: put `pack` timesteps side by side so each row fills 128 lanes.
    if half < 128 and 128 % half == 0:
        pack = 128 // half
    else:
        pack = 1
    lane_width = half * pack

    # Row tiling: big tiles (default 512 rows) amortize per-step overhead;
    # collapses to a single grid step when N is tiny.
    rows_needed = max(1, -(-n // pack))                       # ceil(n / pack)
    tb = min(row_tile, ((rows_needed + 7) // 8) * 8)          # multiple of 8 sublanes
    tb = max(8, (tb // 8) * 8)
    grid = -(-rows_needed // tb)                              # ceil(rows / tb)
    n_rows = grid * tb
    n_pad = n_rows * pack

    # Timestep slab: each group of `half` lanes carries its own timestep.
    ts_padded = jnp.pad(ts_flat, (0, n_pad - n))
    ts_slab = jnp.repeat(ts_padded.reshape(n_rows, pack), half, axis=1)   # (n_rows, L)

    # div_term matches torch init: exp(arange(0, D, 2) * -(log(10000)/D)); tiled per pack group.
    even_indices = jnp.arange(0, dimension, 2, dtype=jnp.float32)
    log_term = jnp.log(jnp.float32(10000.0)) / dimension
    div_term = jnp.exp(even_indices * -log_term)                          # (half,)
    div_slab = jnp.tile(div_term, pack)[None, :]                          # (1, L) constant row

    sin_slab, cos_slab = pl.pallas_call(
        _pe_kernel,
        out_shape=(jax.ShapeDtypeStruct((n_rows, lane_width), jnp.float32),
                   jax.ShapeDtypeStruct((n_rows, lane_width), jnp.float32)),
        grid_spec=pltpu.PrefetchScalarGridSpec(
            num_scalar_prefetch=0,
            grid=(grid,),
            in_specs=[
                pl.BlockSpec((tb, lane_width), lambda i: (i, 0)),   # timestep slab tile
                pl.BlockSpec((1, lane_width), lambda i: (0, 0)),    # constant div row (tiny)
            ],
            out_specs=[
                pl.BlockSpec((tb, lane_width), lambda i: (i, 0)),   # sin slab (lane-dense)
                pl.BlockSpec((tb, lane_width), lambda i: (i, 0)),   # cos slab (lane-dense)
            ],
        ),
        compiler_params=pltpu.CompilerParams(
            dimension_semantics=("parallel",),       # shards steps across TCs on v7x
            vmem_limit_bytes=32 * 1024 * 1024),      # explicit; tiles are tiny anyway
    )(ts_slab, div_slab)

    # Undo packing and interleave: out[..., 2k] = sin, out[..., 2k+1] = cos.
    sin_vals = sin_slab.reshape(n_rows * pack, half)[:n]
    cos_vals = cos_slab.reshape(n_rows * pack, half)[:n]
    out = jnp.stack([sin_vals, cos_vals], axis=-1).reshape(n, dimension)
    return out.reshape(orig_shape + (dimension,))


def _reference_pe_matrix(dimension: int, max_timesteps: int) -> jnp.ndarray:
    # Pure-JAX replica of the torch __init__ buffer, used only for verification.
    even_indices = jnp.arange(0, dimension, 2, dtype=jnp.float32)
    log_term = jnp.log(jnp.float32(10000.0)) / dimension
    div_term = jnp.exp(even_indices * -log_term)
    t = jnp.arange(max_timesteps, dtype=jnp.float32)[:, None]
    pe = jnp.zeros((max_timesteps, dimension), jnp.float32)
    pe = pe.at[:, 0::2].set(jnp.sin(t * div_term))
    pe = pe.at[:, 1::2].set(jnp.cos(t * div_term))
    return pe


if __name__ == "__main__":
    dimension = 32
    max_timesteps = 1000
    batch = 8

    key = jax.random.PRNGKey(0)
    timestep = jax.random.randint(key, (batch,), 0, max_timesteps, dtype=jnp.int32)

    out = sine_positional_encoding(timestep, dimension, max_timesteps)
    out = jax.block_until_ready(out)

    # Verify against the torch-semantics reference (pe_matrix[timestep]).
    ref = _reference_pe_matrix(dimension, max_timesteps)[timestep]
    assert out.shape == timestep.shape + (dimension,)
    assert out.dtype == jnp.float32
    assert jnp.allclose(out, ref, atol=1e-5, rtol=1e-5)

    print("KERNEL_OK")
</pallas_src>

<mosaic_0001>
module attributes {stable_mosaic.version = 11 : i64} {
  func.func @_pe_kernel(%arg0: i32, %arg1: memref<8x128xf32, #tpu.memory_space<vmem>>, %arg2: memref<1x128xf32, #tpu.memory_space<vmem>>, %arg3: memref<8x128xf32, #tpu.memory_space<vmem>>, %arg4: memref<8x128xf32, #tpu.memory_space<vmem>>) attributes {dimension_semantics = [#tpu.dimension_semantics<parallel>], iteration_bounds = array<i64: 1>, scalar_prefetch = 0 : i64, scratch_operands = 0 : i64, tpu.core_type = #tpu.core_type<tc>, window_params = [{transform_indices = @transform_0, window_bounds = array<i64: 8, 128>}, {pipeline_mode = #tpu.pipeline_mode<synchronous>, transform_indices = @transform_1, window_bounds = array<i64: 1, 128>}, {transform_indices = @transform_2, window_bounds = array<i64: 8, 128>}, {transform_indices = @transform_3, window_bounds = array<i64: 8, 128>}]} {
    %c0 = arith.constant 0 : index
    %c0_0 = arith.constant 0 : index
    %0 = vector.load %arg1[%c0, %c0_0] : memref<8x128xf32, #tpu.memory_space<vmem>>, vector<8x128xf32>
    %c0_1 = arith.constant 0 : index
    %c0_2 = arith.constant 0 : index
    %1 = vector.load %arg2[%c0_1, %c0_2] : memref<1x128xf32, #tpu.memory_space<vmem>>, vector<1x128xf32>
    %2 = vector.broadcast %1 : vector<1x128xf32> to vector<8x128xf32>
    %3 = arith.mulf %0, %2 : vector<8x128xf32>
    %4 = math.sin %3 : vector<8x128xf32>
    %c0_3 = arith.constant 0 : index
    %c0_4 = arith.constant 0 : index
    %5 = vector.load %arg3[%c0_3, %c0_4] : memref<8x128xf32, #tpu.memory_space<vmem>>, vector<8x128xf32>
    tpu.vector_store %arg3[%c0_3, %c0_4], %4 {strides = array<i32>} : memref<8x128xf32, #tpu.memory_space<vmem>>, vector<8x128xf32>,
    %6 = math.cos %3 : vector<8x128xf32>
    %c0_5 = arith.constant 0 : index
    %c0_6 = arith.constant 0 : index
    %7 = vector.load %arg4[%c0_5, %c0_6] : memref<8x128xf32, #tpu.memory_space<vmem>>, vector<8x128xf32>
    tpu.vector_store %arg4[%c0_5, %c0_6], %6 {strides = array<i32>} : memref<8x128xf32, #tpu.memory_space<vmem>>, vector<8x128xf32>,
    return
  }
  func.func @transform_0(%arg0: i32) -> (i32, i32) {
    %c0_i32 = arith.constant 0 : i32
    %c0_i32_0 = arith.constant 0 : i32
    return %arg0, %c0_i32 : i32, i32
  }
  func.func @transform_1(%arg0: i32) -> (i32, i32) {
    %c0_i32 = arith.constant 0 : i32
    %c0_i32_0 = arith.constant 0 : i32
    %c0_i32_1 = arith.constant 0 : i32
    return %c0_i32, %c0_i32_0 : i32, i32
  }
  func.func @transform_2(%arg0: i32) -> (i32, i32) {
    %c0_i32 = arith.constant 0 : i32
    %c0_i32_0 = arith.constant 0 : i32
    return %arg0, %c0_i32 : i32, i32
  }
  func.func @transform_3(%arg0: i32) -> (i32, i32) {
    %c0_i32 = arith.constant 0 : i32
    %c0_i32_0 = arith.constant 0 : i32
    return %arg0, %c0_i32 : i32, i32
  }
}

</mosaic_0001>

<llo_original>
// kernel: tile.8
$region0: #{tile.8}
  #allocation0 [shape = 's32[1]{0}', space=sflag, size = 0x4, scoped, tag = 'scoped memory for tile.8']
  %s0 = inlined_call_operand.vmem [shape: f32[16], index: 0, kind: input, shape index: {}]
  %s1 = inlined_call_operand.vmem [shape: f32[8,16], index: 1, kind: output, shape index: {}]
  // Predicated region
  $region2: #{tile.8} parent=0 // pred_check
    _
  $region3: #{tile.8} parent=0 // pred_check_branch
    %3 = sbr.rel (0) target = $region5
  $region4: #{tile.8} parent=0 // pred_region
    _
  $region5: #{tile.8} parent=0 // pred_fallthru
    _
  %v4 = vld [vmem:[%s0] ss:$0 sm:$0xff]
  %5 = vst [vmem:[%s1] sm:$0xff] %v4

// kernel: tile.9
$region0: #{tile.9}
  %s0 = inlined_call_operand.vmem [shape: f32[8,16], index: 0, kind: input, shape index: {}]
  %s1 = inlined_call_operand.vmem [shape: f32[1,128], index: 1, kind: output, shape index: {}]
  $region1: #{tile.9} parent=0
    #allocation0 [shape = 'u8[4096]{0}', space=vmem, size = 0x1000, scoped, tag = 'scoped mem for output reshape']
    %v2 = vld [vmem:[%s0] sm:$0x1]
    %vm3 = vcmask 130048
    %4 = vst.msk [vmem:[#allocation0] sm:$0x1] %vm3, %v2
    %s5 = scalar_lea.vmem %s0, 7
    %v6 = vld [vmem:[%s5] sm:$0x1]
    %7 = vrot.lane.b32.xlu0 %v6, 112
    %v8 = vpop.permute.xlu0 %7
    %vm9 = vcmask 1048448
    %10 = vst.msk [vmem:[#allocation0] sm:$0x1] %vm9, %v8
    %s11 = scalar_lea.vmem %s0, 6
    %v12 = vld [vmem:[%s11] sm:$0x1]
    %13 = vrot.lane.b32.xlu0 %v12, 96
    %v14 = vpop.permute.xlu0 %13
    %vm15 = vcmask 917248
    %16 = vst.msk [vmem:[#allocation0] sm:$0x1] %vm15, %v14
    %s17 = scalar_lea.vmem %s0, 5
    %v18 = vld [vmem:[%s17] sm:$0x1]
    %19 = vrot.lane.b32.xlu0 %v18, 80
    %v20 = vpop.permute.xlu0 %19
    %vm21 = vcmask 786048
    %22 = vst.msk [vmem:[#allocation0] sm:$0x1] %vm21, %v20
    %s23 = scalar_lea.vmem %s0, 4
    %v24 = vld [vmem:[%s23] sm:$0x1]
    %25 = vrot.lane.b32.xlu0 %v24, 64
    %v26 = vpop.permute.xlu0 %25
    %vm27 = vcmask 654848
    %28 = vst.msk [vmem:[#allocation0] sm:$0x1] %vm27, %v26
    %s29 = scalar_lea.vmem %s0, 3
    %v30 = vld [vmem:[%s29] sm:$0x1]
    %31 = vrot.lane.b32.xlu0 %v30, 48
    %v32 = vpop.permute.xlu0 %31
    %vm33 = vcmask 523648
    %34 = vst.msk [vmem:[#allocation0] sm:$0x1] %vm33, %v32
    %s35 = scalar_lea.vmem %s0, 2
    %v36 = vld [vmem:[%s35] sm:$0x1]
    %37 = vrot.lane.b32.xlu0 %v36, 32
    %v38 = vpop.permute.xlu0 %37
    %vm39 = vcmask 392448
    %40 = vst.msk [vmem:[#allocation0] sm:$0x1] %vm39, %v38
    %s41 = scalar_lea.vmem %s0, 1
    %v42 = vld [vmem:[%s41] sm:$0x1]
    %43 = vrot.lane.b32.xlu0 %v42, 16
    %v44 = vpop.permute.xlu0 %43
    %vm45 = vcmask 261248
    %46 = vst.msk [vmem:[#allocation0] sm:$0x1] %vm45, %v44
    %s48 = ssub.s32 2, 1
    %v49 = vld [vmem:[#allocation0] sm:%s48]
    %s51 = ssub.s32 2, 1
    %52 = vst [vmem:[%s1] sm:%s51] %v49

// kernel: sine_positional_encoding.1
$region0: #{sine_positional_encoding.1}
  #allocation0 [shape = 'u32[]', space=smem, size = 0x4, offset = 0x4, fixed_abs, tag = 'smem constant byte address 0x4 - core index']
  #allocation1 [shape = 'u32[72,128]{1,0:T(1,128)}', space=vmem, size = 0x9000, scoped, tag = 'internal scratch']
  %s0 = inlined_call_operand.vmem [shape: f32[8,128], index: 0, kind: input, shape index: {}]
  %s1 = inlined_call_operand.vmem [shape: f32[1,128], index: 1, kind: input, shape index: {}]
  %s2 = inlined_call_operand.vmem [shape: f32[8,128], index: 2, kind: output, shape index: {0}]
  %s3 = inlined_call_operand.vmem [shape: f32[8,128], index: 3, kind: output, shape index: {1}]
  %4 = xla_tuple %s2, %s3
  %s5 = sld [smem:[#allocation0]]
  $region26: #{sine_positional_encoding.1} parent=0
    _
  %s7 = ssub.s32 1, %s5
  %s8 = scalar_select 0, %s7, %s5
  // Predicated region
  $region2: #{sine_positional_encoding.1} parent=0 // pred_check
    _
  $region3: #{sine_positional_encoding.1} parent=0 // pred_check_branch
    %10 = sbr.rel (0) target = $region5
  $region4: #{sine_positional_encoding.1} parent=0 // pred_region
    _
  $region5: #{sine_positional_encoding.1} parent=0 // pred_fallthru
    _
  // Predicated region
  $region6: #{sine_positional_encoding.1} parent=0 // pred_check
    _
  $region7: #{sine_positional_encoding.1} parent=0 // pred_check_branch
    %12 = sbr.rel (0) target = $region9
  $region8: #{sine_positional_encoding.1} parent=0 // pred_region
    _
  $region9: #{sine_positional_encoding.1} parent=0 // pred_fallthru
    _
  %v13 = vld [vmem:[%s0] sm:$0xff]
  %v14 = vld [vmem:[%s1] sm:$0x1]
  %v16 = vperm.slane %v14, 0
  %v18 = vmul.f32 %v13, %v16
  %v19 = vand.u32 2147483647, %v18
  %vm20 = vcmp.le.f32.partialorder %v19, 0.7853982
  %vm21 = vcmp.lt.s32.totalorder %v18, 0
  %v22 = vand.u32 %v18, 2139095040
  %v23 = vshrl.u32 %v22, 23
  %v24 = vsub.s32 %v23, 127
  %v25 = vand.u32 2147483647, %v18
  %v26 = vand.u32 %v25, 8388607
  %v27 = vor.u32 %v26, 8388608
  %v28 = vsub.s32 0, %v27
  %v29 = vadd.s32 %v24, 1
  %vm30 = vcmp.gt.s32.totalorder %v29, 0
  %v31 = vsel %vm30, %v29, 0
  %v32 = vshrl.u32 %v31, 5
  %v33 = vand.u32 %v31, 31
  %v34 = vsub.s32 32, %v33
  %v35 = vshrl.u32 683565275, %v34
  %v36 = vshll.u32 683565275, %v33
  %v37 = vshrl.u32 2475754826, %v34
  %v38 = vor.u32 %v36, %v37
  %v39 = vshll.u32 2475754826, %v33
  %v40 = vshrl.u32 2131351028, %v34
  %v41 = vor.u32 %v39, %v40
  %v42 = vshll.u32 2131351028, %v33
  %v43 = vshrl.u32 2102212464, %v34
  %v44 = vor.u32 %v42, %v43
  %v45 = vshll.u32 2102212464, %v33
  %v46 = vshrl.u32 920167782, %v34
  %v47 = vor.u32 %v45, %v46
  %v48 = vshll.u32 920167782, %v33
  %v49 = vshrl.u32 1326507024, %v34
  %v50 = vor.u32 %v48, %v49
  %vm51 = vcmp.lt.s32.totalorder %v32, 1
  %vm52 = vcmp.lt.s32.totalorder %v32, 2
  %vm53 = vcmp.lt.s32.totalorder %v32, 3
  %vm54 = vcmp.lt.s32.totalorder %v32, 4
  %v55 = vsel %vm51, %v35, %v38
  %v56 = vsel %vm54, %v44, 2102212464
  %v57 = vsel %vm53, %v41, %v56
  %v58 = vsel %vm52, %v55, %v57
  %v59 = vsel %vm51, %v38, %v41
  %v60 = vsel %vm54, %v47, 920167782
  %v61 = vsel %vm53, %v44, %v60
  %v62 = vsel %vm52, %v59, %v61
  %v63 = vsel %vm51, %v41, %v44
  %v64 = vsel %vm54, %v50, 1326507024
  %v65 = vsel %vm53, %v47, %v64
  %v66 = vsel %vm52, %v63, %v65
  %v67 = vshll.u32 %v27, 8
  %v68 = vand.u32 %v67, 65535
  %v69 = vshrl.u32 %v67, 16
  %v70 = vand.u32 %v66, 65535
  %v71 = vshrl.u32 %v66, 16
  %v72 = vmul.u32 %v68, %v70
  %v73 = vmul.u32 %v68, %v71
  %v74 = vmul.u32 %v69, %v70
  %v75 = vmul.u32 %v69, %v71
  %v76 = vshll.u32 %v73, 16
  %v77 = vshrl.u32 %v73, 16
  %v78 = vshll.u32 %v74, 16
  %v79 = vshrl.u32 %v74, 16
  %vm80 = vc.u32 %v72, %v76
  %v81 = vsel %vm80, 1, 0
  %v82 = vadd.s32 %v72, %v76
  %v83 = vadd.s32 %v75, %v81
  %vm84 = vc.u32 %v82, %v78
  %v85 = vsel %vm84, 1, 0
  %v86 = vadd.s32 %v82, %v78
  %v87 = vadd.s32 %v83, %v85
  %v88 = vadd.s32 %v87, %v77
  %v89 = vadd.s32 %v88, %v79
  %v90 = vand.u32 %v67, 65535
  %v91 = vshrl.u32 %v67, 16
  %v92 = vand.u32 %v62, 65535
  %v93 = vshrl.u32 %v62, 16
  %v94 = vmul.u32 %v90, %v92
  %v95 = vmul.u32 %v90, %v93
  %v96 = vmul.u32 %v91, %v92
  %v97 = vmul.u32 %v91, %v93
  %v98 = vshll.u32 %v95, 16
  %v99 = vshrl.u32 %v95, 16
  %v100 = vshll.u32 %v96, 16
  %v101 = vshrl.u32 %v96, 16
  %vm102 = vc.u32 %v94, %v98
  %v103 = vsel %vm102, 1, 0
  %v104 = vadd.s32 %v94, %v98
  %v105 = vadd.s32 %v97, %v103
  %vm106 = vc.u32 %v104, %v100
  %v107 = vsel %vm106, 1, 0
  %v108 = vadd.s32 %v104, %v100
  %v109 = vadd.s32 %v105, %v107
  %v110 = vadd.s32 %v109, %v99
  %v111 = vadd.s32 %v110, %v101
  %v112 = vmul.u32 %v67, %v58
  %v113 = vadd.s32 %v89, %v108
  %vm114 = vc.u32 %v89, %v108
  %v115 = vadd.s32 %v111, 1
  %v116 = vsel %vm114, %v115, %v111
  %v117 = vadd.s32 %v112, %v116
  %v118 = vadd.s32 %v117, 536870912
  %v119 = vshrl.u32 %v118, 30
  %v120 = vshll.u32 %v119, 30
  %v121 = vsub.s32 %v117, %v120
  %vm122 = vcmp.lt.s32.totalorder %v121, 0
  %v123 = vsub.s32 0, %v121
  %v124 = vsel %vm122, %v123, %v121
  %v125 = vclz %v124
  %v126 = vsub.s32 %v125, 2
  %vm127 = vcmp.gt.s32.totalorder 0, %v126
  %v128 = vsel %vm127, 0, %v126
  %v129 = vsub.s32 32, %v128
  %v130 = vshll.u32 %v121, %v128
  %v131 = vshrl.u32 %v113, %v129
  %v132 = vor.u32 %v130, %v131
  %v133 = vsub.s32 4294967266, %v128
  %v134 = vadd.s32 %v133, 127
  %v135 = vshll.u32 %v134, 23
  %v136 = vor.u32 4788187, %v135
  %v137 = vand.u32 2147483647, %v136
  %v139 = vcvt.s32.f32 %v132
  %v140 = vmul.f32 %v139, %v137
  %v141 = vxor.u32 %v140, 2147483648
  %v142 = vsel %vm21, %v141, %v140
  %v143 = vsub.s32 4, %v119
  %v144 = vsel %vm21, %v143, %v119
  %v145 = vsel %vm20, %v18, %v142
  %v146 = vsel %vm20, 0, %v144
  %v147 = vmul.f32 %v145, %v145
  %v148 = vmul.f32 %v147, -0.001358992
  %v149 = vadd.f32 %v148, 0.041655596
  %v150 = vmul.f32 %v147, %v149
  %v151 = vadd.f32 %v150, -0.4999988
  %v152 = vmul.f32 %v147, %v151
  %v153 = vadd.f32 1.0, %v152
  %v154 = vmul.f32 %v145, %v145
  %v155 = vmul.f32 %v154, -0.00019511016
  %v156 = vadd.f32 %v155, 0.008332121
  %v157 = vmul.f32 %v154, %v156
  %v158 = vadd.f32 %v157, -0.16666654
  %v159 = vmul.f32 %v154, %v158
  %v160 = vadd.f32 %v159, 1.0
  %v161 = vmul.f32 %v160, %v145
  %vm162 = vweird.f32 %v18
  %v163 = vadd.s32 %v146, 3
  %v164 = vand.u32 %v163, 3
  %vm165 = vcmp.lt.s32.totalorder %v164, 2
  %vm166 = vcmp.eq.s32.totalorder %v164, 0
  %v167 = vxor.u32 %v161, 2147483648
  %v168 = vsel %vm166, %v153, %v167
  %vm169 = vcmp.eq.s32.totalorder %v164, 2
  %v170 = vxor.u32 %v153, 2147483648
  %v171 = vsel %vm169, %v170, %v161
  %v172 = vsel %vm165, %v168, %v171
  %v173 = vsel %vm162, nan, %v172
  %174 = vst [vmem:[%s2] sm:$0xff] %v173
  %v175 = vand.u32 2147483647, %v18
  %vm176 = vcmp.le.f32.partialorder %v175, 0.7853982
  %vm177 = vcmp.lt.s32.totalorder %v18, 0
  %v178 = vand.u32 %v18, 2139095040
  %v179 = vshrl.u32 %v178, 23
  %v180 = vsub.s32 %v179, 127
  %v181 = vand.u32 2147483647, %v18
  %v182 = vand.u32 %v181, 8388607
  %v183 = vor.u32 %v182, 8388608
  %v184 = vsub.s32 0, %v183
  %v185 = vadd.s32 %v180, 1
  %vm186 = vcmp.gt.s32.totalorder %v185, 0
  %v187 = vsel %vm186, %v185, 0
  %v188 = vshrl.u32 %v187, 5
  %v189 = vand.u32 %v187, 31
  %v190 = vsub.s32 32, %v189
  %v191 = vshrl.u32 683565275, %v190
  %v192 = vshll.u32 683565275, %v189
  %v193 = vshrl.u32 2475754826, %v190
  %v194 = vor.u32 %v192, %v193
  %v195 = vshll.u32 2475754826, %v189
  %v196 = vshrl.u32 2131351028, %v190
  %v197 = vor.u32 %v195, %v196
  %v198 = vshll.u32 2131351028, %v189
  %v199 = vshrl.u32 2102212464, %v190
  %v200 = vor.u32 %v198, %v199
  %v201 = vshll.u32 2102212464, %v189
  %v202 = vshrl.u32 920167782, %v190
  %v203 = vor.u32 %v201, %v202
  %v204 = vshll.u32 920167782, %v189
  %v205 = vshrl.u32 1326507024, %v190
  %v206 = vor.u32 %v204, %v205
  %vm207 = vcmp.lt.s32.totalorder %v188, 1
  %vm208 = vcmp.lt.s32.totalorder %v188, 2
  %vm209 = vcmp.lt.s32.totalorder %v188, 3
  %vm210 = vcmp.lt.s32.totalorder %v188, 4
  %v211 = vsel %vm207, %v191, %v194
  %v212 = vsel %vm210, %v200, 2102212464
  %v213 = vsel %vm209, %v197, %v212
  %v214 = vsel %vm208, %v211, %v213
  %v215 = vsel %vm207, %v194, %v197
  %v216 = vsel %vm210, %v203, 920167782
  %v217 = vsel %vm209, %v200, %v216
  %v218 = vsel %vm208, %v215, %v217
  %v219 = vsel %vm207, %v197, %v200
  %v220 = vsel %vm210, %v206, 1326507024
  %v221 = vsel %vm209, %v203, %v220
  %v222 = vsel %vm208, %v219, %v221
  %v223 = vshll.u32 %v183, 8
  %v224 = vand.u32 %v223, 65535
  %v225 = vshrl.u32 %v223, 16
  %v226 = vand.u32 %v222, 65535
  %v227 = vshrl.u32 %v222, 16
  %v228 = vmul.u32 %v224, %v226
  %v229 = vmul.u32 %v224, %v227
  %v230 = vmul.u32 %v225, %v226
  %v231 = vmul.u32 %v225, %v227
  %v232 = vshll.u32 %v229, 16
  %v233 = vshrl.u32 %v229, 16
  %v234 = vshll.u32 %v230, 16
  %v235 = vshrl.u32 %v230, 16
  %vm236 = vc.u32 %v228, %v232
  %v237 = vsel %vm236, 1, 0
  %v238 = vadd.s32 %v228, %v232
  %v239 = vadd.s32 %v231, %v237
  %vm240 = vc.u32 %v238, %v234
  %v241 = vsel %vm240, 1, 0
  %v242 = vadd.s32 %v238, %v234
  %v243 = vadd.s32 %v239, %v241
  %v244 = vadd.s32 %v243, %v233
  %v245 = vadd.s32 %v244, %v235
  %v246 = vand.u32 %v223, 65535
  %v247 = vshrl.u32 %v223, 16
  %v248 = vand.u32 %v218, 65535
  %v249 = vshrl.u32 %v218, 16
  %v250 = vmul.u32 %v246, %v248
  %v251 = vmul.u32 %v246, %v249
  %v252 = vmul.u32 %v247, %v248
  %v253 = vmul.u32 %v247, %v249
  %v254 = vshll.u32 %v251, 16
  %v255 = vshrl.u32 %v251, 16
  %v256 = vshll.u32 %v252, 16
  %v257 = vshrl.u32 %v252, 16
  %vm258 = vc.u32 %v250, %v254
  %v259 = vsel %vm258, 1, 0
  %v260 = vadd.s32 %v250, %v254
  %v261 = vadd.s32 %v253, %v259
  %vm262 = vc.u32 %v260, %v256
  %v263 = vsel %vm262, 1, 0
  %v264 = vadd.s32 %v260, %v256
  %v265 = vadd.s32 %v261, %v263
  %v266 = vadd.s32 %v265, %v255
  %v267 = vadd.s32 %v266, %v257
  %v268 = vmul.u32 %v223, %v214
  %v269 = vadd.s32 %v245, %v264
  %vm270 = vc.u32 %v245, %v264
  %v271 = vadd.s32 %v267, 1
  %v272 = vsel %vm270, %v271, %v267
  %v273 = vadd.s32 %v268, %v272
  %v274 = vadd.s32 %v273, 536870912
  %v275 = vshrl.u32 %v274, 30
  %v276 = vshll.u32 %v275, 30
  %v277 = vsub.s32 %v273, %v276
  %vm278 = vcmp.lt.s32.totalorder %v277, 0
  %v279 = vsub.s32 0, %v277
  %v280 = vsel %vm278, %v279, %v277
  %v281 = vclz %v280
  %v282 = vsub.s32 %v281, 2
  %vm283 = vcmp.gt.s32.totalorder 0, %v282
  %v284 = vsel %vm283, 0, %v282
  %v285 = vsub.s32 32, %v284
  %v286 = vshll.u32 %v277, %v284
  %v287 = vshrl.u32 %v269, %v285
  %v288 = vor.u32 %v286, %v287
  %v289 = vsub.s32 4294967266, %v284
  %v290 = vadd.s32 %v289, 127
  %v291 = vshll.u32 %v290, 23
  %v292 = vor.u32 4788187, %v291
  %v293 = vand.u32 2147483647, %v292
  %v295 = vcvt.s32.f32 %v288
  %v296 = vmul.f32 %v295, %v293
  %v297 = vxor.u32 %v296, 2147483648
  %v298 = vsel %vm177, %v297, %v296
  %v299 = vsub.s32 4, %v275
  %v300 = vsel %vm177, %v299, %v275
  %v301 = vsel %vm176, %v18, %v298
  %v302 = vsel %vm176, 0, %v300
  %v303 = vmul.f32 %v301, %v301
  %v304 = vmul.f32 %v303, -0.001358992
  %v305 = vadd.f32 %v304, 0.041655596
  %v306 = vmul.f32 %v303, %v305
  %v307 = vadd.f32 %v306, -0.4999988
  %v308 = vmul.f32 %v303, %v307
  %v309 = vadd.f32 1.0, %v308
  %v310 = vmul.f32 %v301, %v301
  %v311 = vmul.f32 %v310, -0.00019511016
  %v312 = vadd.f32 %v311, 0.008332121
  %v313 = vmul.f32 %v310, %v312
  %v314 = vadd.f32 %v313, -0.16666654
  %v315 = vmul.f32 %v310, %v314
  %v316 = vadd.f32 %v315, 1.0
  %v317 = vmul.f32 %v316, %v301
  %vm318 = vweird.f32 %v18
  %v319 = vand.u32 %v302, 3
  %vm320 = vcmp.lt.s32.totalorder %v319, 2
  %vm321 = vcmp.eq.s32.totalorder %v319, 0
  %v322 = vxor.u32 %v317, 2147483648
  %v323 = vsel %vm321, %v309, %v322
  %vm324 = vcmp.eq.s32.totalorder %v319, 2
  %v325 = vxor.u32 %v309, 2147483648
  %v326 = vsel %vm324, %v325, %v317
  %v327 = vsel %vm320, %v323, %v326
  %v328 = vsel %vm318, nan, %v327
  %329 = vst [vmem:[%s3] sm:$0xff] %v328
  // Predicated region
  $region10: #{sine_positional_encoding.1} parent=0 // pred_check
    _
  $region11: #{sine_positional_encoding.1} parent=0 // pred_check_branch
    %331 = sbr.rel (0) target = $region13
  $region12: #{sine_positional_encoding.1} parent=0 // pred_region
    _
  $region13: #{sine_positional_encoding.1} parent=0 // pred_fallthru
    _
  // Predicated region
  $region14: #{sine_positional_encoding.1} parent=0 // pred_check
    _
  $region15: #{sine_positional_encoding.1} parent=0 // pred_check_branch
    %333 = sbr.rel (0) target = $region17
  $region16: #{sine_positional_encoding.1} parent=0 // pred_region
    _
  $region17: #{sine_positional_encoding.1} parent=0 // pred_fallthru
    _
  // Predicated region
  $region18: #{sine_positional_encoding.1} parent=0 // pred_check
    _
  $region19: #{sine_positional_encoding.1} parent=0 // pred_check_branch
    %335 = sbr.rel (0) target = $region21
  $region20: #{sine_positional_encoding.1} parent=0 // pred_region
    _
  $region21: #{sine_positional_encoding.1} parent=0 // pred_fallthru
    _
  // Predicated region
  $region22: #{sine_positional_encoding.1} parent=0 // pred_check
    _
  $region23: #{sine_positional_encoding.1} parent=0 // pred_check_branch
    %337 = sbr.rel (0) target = $region25
  $region24: #{sine_positional_encoding.1} parent=0 // pred_region
    _
  $region25: #{sine_positional_encoding.1} parent=0 // pred_fallthru
    _

</llo_original>
